<compile_context>
chip_gen: v6e
topology: v6e:2x2x1
jax: 0.10.0
libtpu: 0.0.40
codegen_flags: <defaults>
</compile_context>

<pallas_src>
import functools

import jax
import jax.numpy as jnp
from jax.experimental import pallas as pl
from jax.experimental.pallas import tpu as pltpu

_MIB = 1024 * 1024


def _vmem_capacity_bytes() -> int:
    try:
        info = pltpu.get_tpu_info()
        cap = getattr(info, "vmem_capacity_bytes", None)
        if cap:
            return int(cap)
    except Exception:
        pass
    return 64 * _MIB  # conservative (v7x-sized) fallback


def _num_tensorcores() -> int:
    # 2 TensorCores/chip only on v7x; fall back to 1 if undetectable.
    try:
        info = pltpu.get_tpu_info()
        for attr in ("num_cores", "tensorcore_count", "num_tensorcores",
                     "cores_per_chip"):
            v = getattr(info, attr, None)
            if v:
                return max(1, min(int(v), 2))
    except Exception:
        pass
    try:
        v = getattr(jax.devices()[0], "num_cores", None)
        if v:
            return max(1, min(int(v), 2))
    except Exception:
        pass
    return 1


def _focal_kernel(out_ref, lab_ref, alphat_ref, sum_ref, cnt_ref,
                  sum_acc, cnt_acc, *, gamma: float, ignore_index: int,
                  n_rows: int, tile_n: int, steps_per_part: int):
    p = pl.program_id(0)          # partial (megacore) axis
    r = pl.program_id(1)          # row-tile axis (reduction, "arbitrary")
    n_r = pl.num_programs(1)

    @pl.when(r == 0)
    def _():
        sum_acc[...] = jnp.zeros_like(sum_acc)
        cnt_acc[...] = jnp.zeros_like(cnt_acc)

    x = out_ref[...].astype(jnp.float32)          # (tile_n, C) logits
    lab = lab_ref[...]                            # (tile_n, 1) int32
    alpha_t = alphat_ref[...]                     # (tile_n, 1) f32, pre-gathered
    tn, c = x.shape

    # Global row index of each sublane row; masks both the grid-overrun tiles
    # (clamped index_map) and the partial last block's out-of-bounds rows.
    tile_idx = p * steps_per_part + r
    row0 = tile_idx * tile_n
    row_ids = row0 + jax.lax.broadcasted_iota(jnp.int32, (tn, 1), 0)
    valid = jnp.logical_and(row_ids < n_rows, lab != ignore_index)
    # Clamp so garbage labels in OOB rows (and out-of-range user labels) never
    # select an out-of-range column; their rows are masked out anyway.
    safe_lab = jnp.clip(jnp.where(valid, lab, 0), 0, c - 1)

    # Single boolean label mask, reused; no f32 one-hot, no materialized log_p.
    sel = jax.lax.broadcasted_iota(jnp.int32, (tn, c), 1) == safe_lab

    # Numerically-stable log-softmax evaluated only at the label column:
    #   log_pt = (x_t - m) - log(sum(exp(x - m)))
    m = jnp.max(x, axis=-1, keepdims=True)
    z = x - m
    s = jnp.sum(jnp.exp(z), axis=-1, keepdims=True)
    z_t = jnp.sum(jnp.where(sel, z, 0.0), axis=-1, keepdims=True)
    log_pt = z_t - jnp.log(s)                     # (tile_n, 1)

    pt = jnp.exp(log_pt)
    ce = -alpha_t * log_pt                        # weighted NLL (per row)
    omp = jnp.clip(1.0 - pt, 0.0, 1.0)

    # Small integer gamma -> VALU multiplies instead of EUP pow (= exp(log)).
    if gamma == 0.0:
        focal = jnp.ones_like(omp)
    elif float(gamma).is_integer() and 1 <= int(gamma) <= 4:
        focal = omp
        for _ in range(int(gamma) - 1):
            focal = focal * omp
    else:
        focal = jnp.power(omp, gamma)

    # where() (not mask-multiply) so garbage/NaN in OOB rows never leaks in.
    per = jnp.where(valid, focal * ce, 0.0)
    sum_acc[...] += per
    cnt_acc[...] += valid.astype(jnp.float32)

    # Single cross-sublane reduce + output write per partial (deferred).
    @pl.when(r == n_r - 1)
    def _():
        sum_ref[...] = jnp.full(sum_ref.shape, jnp.sum(sum_acc[...]), jnp.float32)
        cnt_ref[...] = jnp.full(cnt_ref.shape, jnp.sum(cnt_acc[...]), jnp.float32)


def focal_loss(outputs, labels, alpha, gamma=2.0, reduction="mean",
               ignore_index=-100, tile_n=None, num_parts=None,
               vmem_limit_bytes=None):
    """outputs: [N, C] float (f32 or bf16), labels: [N] int,
    alpha: [C] float per-class weights, or None."""
    n, c = outputs.shape
    if n == 0:
        return jnp.float32(0.0)

    itemsize = jnp.dtype(outputs.dtype).itemsize
    vmem_cap = _vmem_capacity_bytes()

    if vmem_limit_bytes is None:
        # ~48 MiB scoped limit on v7x (64 MiB VMEM), ~96 MiB on v5e/v6e (128 MiB).
        vmem_limit_bytes = min(vmem_cap - 8 * _MIB,
                               max(48 * _MIB, (vmem_cap * 3) // 4))

    n16 = ((n + 15) // 16) * 16
    if tile_n is None:
        # Size the tile by the *total* in-kernel working set, per generation:
        #   2 * tile_n * C_pad * itemsize   double-buffered logits block
        # + K * tile_n * C_pad * 4          ~K live f32 (tile_n, C) temporaries
        # + small per-row vectors, targeting ~2/3 of physical VMEM.
        # C_pad accounts for lane padding to 128.
        # TODO(synk): for C <= 64, pack 128//C rows per lane row with segmented
        # reductions to recover the wasted lanes; not implemented here.
        budget = (vmem_cap * 2) // 3
        c_pad = ((c + 127) // 128) * 128
        k_live = 4
        bytes_per_row = 2 * c_pad * itemsize + k_live * c_pad * 4 + 64
        tile_n = max(16, budget // bytes_per_row)
    tile_n = min(int(tile_n), n16)
    tile_n = max(16, (tile_n // 16) * 16)   # multiple of 16: legal for bf16 too

    num_tiles = (n + tile_n - 1) // tile_n
    if num_parts is None:
        num_parts = _num_tensorcores()      # 2 only on dual-TC chips (v7x)
    num_parts = max(1, min(int(num_parts), num_tiles))
    steps_per_part = (num_tiles + num_parts - 1) // num_parts

    labels_i32 = labels.astype(jnp.int32)
    labels_2d = labels_i32.reshape(n, 1)
    # Pre-gather per-row class weight alpha_t = alpha[label] with a cheap XLA
    # gather (N*4 HBM bytes) instead of an in-kernel (tile_n, C) one-hot reduce.
    if alpha is None:
        alpha_t_2d = jnp.ones((n, 1), jnp.float32)
    else:
        alpha_arr = jnp.asarray(alpha, jnp.float32).reshape(c)
        safe = jnp.clip(jnp.where(labels_i32 == ignore_index, 0, labels_i32),
                        0, c - 1)
        alpha_t_2d = alpha_arr[safe].reshape(n, 1).astype(jnp.float32)

    def row_map(p, r):
        # Clamp grid-overrun steps onto the last valid tile; the kernel masks
        # their rows out via the global row index.
        return (jnp.minimum(p * steps_per_part + r, num_tiles - 1), 0)

    kernel = functools.partial(
        _focal_kernel, gamma=float(gamma), ignore_index=int(ignore_index),
        n_rows=int(n), tile_n=int(tile_n), steps_per_part=int(steps_per_part))

    sum_parts, cnt_parts = pl.pallas_call(
        kernel,
        out_shape=(jax.ShapeDtypeStruct((num_parts, 8, 128), jnp.float32),
                   jax.ShapeDtypeStruct((num_parts, 8, 128), jnp.float32)),
        grid_spec=pltpu.PrefetchScalarGridSpec(
            num_scalar_prefetch=0,
            grid=(num_parts, steps_per_part),
            in_specs=[
                pl.BlockSpec((tile_n, c), row_map),
                pl.BlockSpec((tile_n, 1), row_map),
                pl.BlockSpec((tile_n, 1), row_map),
            ],
            out_specs=[
                pl.BlockSpec((1, 8, 128), lambda p, r: (p, 0, 0)),
                pl.BlockSpec((1, 8, 128), lambda p, r: (p, 0, 0)),
            ],
            scratch_shapes=[
                pltpu.VMEM((tile_n, 1), jnp.float32),   # per-row loss partials
                pltpu.VMEM((tile_n, 1), jnp.float32),   # per-row count partials
            ],
        ),
        compiler_params=pltpu.CompilerParams(
            dimension_semantics=("parallel", "arbitrary"),
            vmem_limit_bytes=int(vmem_limit_bytes)),
    )(outputs, labels_2d, alpha_t_2d)

    loss_sum = jnp.sum(sum_parts[:, 0, 0])
    count = jnp.sum(cnt_parts[:, 0, 0])

    if reduction == "mean":
        # The torch module applies .mean() over the unignored rows (NLLLoss is
        # reduction='none'), i.e. divide by the row count (not sum(alpha_t));
        # also matches its early-return 0.0 when every label is ignored.
        return jnp.where(count > 0, loss_sum / jnp.maximum(count, 1.0), 0.0)
    elif reduction == "sum":
        return loss_sum
    else:
        # TODO(synk): reduction='none' needs a dynamically-sized per-unignored-
        # example output (torch filters ignored rows); only 'mean'/'sum' here.
        raise NotImplementedError("reduction must be 'mean' or 'sum'")


def _focal_loss_ref(outputs, labels, alpha, gamma, ignore_index, reduction):
    n, c = outputs.shape
    if alpha is None:
        alpha = jnp.ones((c,), jnp.float32)
    alpha = jnp.asarray(alpha, jnp.float32)
    mask = labels != ignore_index
    safe = jnp.where(mask, labels, 0)
    log_p = jax.nn.log_softmax(outputs.astype(jnp.float32), axis=-1)
    log_pt = jnp.take_along_axis(log_p, safe[:, None], axis=-1)[:, 0]
    alpha_t = alpha[safe]
    pt = jnp.exp(log_pt)
    ce = -alpha_t * log_pt
    focal = jnp.power(jnp.clip(1.0 - pt, 0.0, 1.0), gamma)
    per = focal * ce * mask
    if reduction == "sum":
        return jnp.sum(per)
    cnt = jnp.sum(mask)
    return jnp.where(cnt > 0, jnp.sum(per) / jnp.maximum(cnt, 1), 0.0)


if __name__ == "__main__":
    key = jax.random.PRNGKey(0)
    k1, k2, k3 = jax.random.split(key, 3)

    N, C = 50, 32
    gamma = 2.0
    ignore_index = -100

    outputs = jax.random.normal(k1, (N, C), dtype=jnp.float32)
    labels = jax.random.randint(k2, (N,), 0, C, dtype=jnp.int32)
    labels = labels.at[jnp.array([3, 7, 12, 41])].set(ignore_index)
    alpha = 0.5 + 0.5 * (jnp.arange(C, dtype=jnp.float32) / C)

    # Small forced tile + two partials: exercises multi-tile grid, megacore
    # path, partial last block and in-kernel row masking.
    loss = focal_loss(outputs, labels, alpha, gamma=gamma, reduction="mean",
                      ignore_index=ignore_index, tile_n=16, num_parts=2)
    loss = jax.block_until_ready(loss)
    ref = _focal_loss_ref(outputs, labels, alpha, gamma, ignore_index, "mean")
    assert jnp.allclose(loss, ref, rtol=1e-5, atol=1e-6), (loss, ref)

    # Default (auto-sized, generation-aware) tile, sum reduction.
    loss_sum = focal_loss(outputs, labels, alpha, gamma=gamma, reduction="sum",
                          ignore_index=ignore_index)
    loss_sum = jax.block_until_ready(loss_sum)
    ref_sum = _focal_loss_ref(outputs, labels, alpha, gamma, ignore_index, "sum")
    assert jnp.allclose(loss_sum, ref_sum, rtol=1e-5, atol=1e-6), (loss_sum, ref_sum)

    # bf16 logits go through the kernel in their native dtype (half HBM traffic).
    out_bf16 = outputs.astype(jnp.bfloat16)
    loss_bf = focal_loss(out_bf16, labels, alpha, gamma=gamma, reduction="mean",
                         ignore_index=ignore_index)
    loss_bf = jax.block_until_ready(loss_bf)
    ref_bf = _focal_loss_ref(out_bf16.astype(jnp.float32), labels, alpha, gamma,
                             ignore_index, "mean")
    assert jnp.allclose(loss_bf, ref_bf, rtol=1e-5, atol=1e-6), (loss_bf, ref_bf)

    # All labels ignored -> 0.0 (matches the torch early-return).
    all_ign = jnp.full((N,), ignore_index, jnp.int32)
    z = focal_loss(outputs, all_ign, alpha, gamma=gamma, reduction="mean",
                   ignore_index=ignore_index)
    z = jax.block_until_ready(z)
    assert jnp.allclose(z, 0.0), z

    # alpha=None (unweighted NLL), non-integer gamma, C not a lane multiple.
    N2, C2 = 24, 200
    out2 = jax.random.normal(k3, (N2, C2), dtype=jnp.float32)
    lab2 = jax.random.randint(k2, (N2,), 0, C2, dtype=jnp.int32)
    lab2 = lab2.at[jnp.array([0, 5])].set(ignore_index)
    l2 = focal_loss(out2, lab2, None, gamma=2.5, reduction="sum",
                    ignore_index=ignore_index)
    l2 = jax.block_until_ready(l2)
    r2 = _focal_loss_ref(out2, lab2, None, 2.5, ignore_index, "sum")
    assert jnp.allclose(l2, r2, rtol=1e-5, atol=1e-6), (l2, r2)

    print("KERNEL_OK")
</pallas_src>

<mosaic_0001>
module attributes {stable_mosaic.version = 11 : i64} {
  func.func @_focal_kernel(%arg0: i32, %arg1: i32, %arg2: memref<16x32xf32, #tpu.memory_space<vmem>>, %arg3: memref<16x1xi32, #tpu.memory_space<vmem>>, %arg4: memref<16x1xf32, #tpu.memory_space<vmem>>, %arg5: memref<1x8x128xf32, #tpu.memory_space<vmem>>, %arg6: memref<1x8x128xf32, #tpu.memory_space<vmem>>, %arg7: memref<16x1xf32, #tpu.memory_space<vmem>>, %arg8: memref<16x1xf32, #tpu.memory_space<vmem>>) attributes {dimension_semantics = [#tpu.dimension_semantics<parallel>, #tpu.dimension_semantics<arbitrary>], iteration_bounds = array<i64: 2, 2>, scalar_prefetch = 0 : i64, scratch_operands = 2 : i64, tpu.core_type = #tpu.core_type<tc>, window_params = [{transform_indices = @transform_0, window_bounds = array<i64: 16, 32>}, {transform_indices = @transform_1, window_bounds = array<i64: 16, 1>}, {transform_indices = @transform_2, window_bounds = array<i64: 16, 1>}, {transform_indices = @transform_3, window_bounds = array<i64: 1, 8, 128>}, {transform_indices = @transform_4, window_bounds = array<i64: 1, 8, 128>}]} {
    %c0_i32 = arith.constant 0 : i32
    %0 = arith.cmpi eq, %arg1, %c0_i32 : i32
    %1 = arith.extui %0 : i1 to i32
    %c0_i32_0 = arith.constant 0 : i32
    %2 = arith.cmpi ne, %1, %c0_i32_0 : i32
    scf.if %2 {
      %cst_25 = arith.constant 0.000000e+00 : f32
      %64 = vector.broadcast %cst_25 : f32 to vector<16x1xf32>
      %c0_26 = arith.constant 0 : index
      %c0_27 = arith.constant 0 : index
      %65 = vector.load %arg7[%c0_26, %c0_27] : memref<16x1xf32, #tpu.memory_space<vmem>>, vector<16x1xf32>
      tpu.vector_store %arg7[%c0_26, %c0_27], %64 {strides = array<i32>} : memref<16x1xf32, #tpu.memory_space<vmem>>, vector<16x1xf32>,
      %cst_28 = arith.constant 0.000000e+00 : f32
      %66 = vector.broadcast %cst_28 : f32 to vector<16x1xf32>
      %c0_29 = arith.constant 0 : index
      %c0_30 = arith.constant 0 : index
      %67 = vector.load %arg8[%c0_29, %c0_30] : memref<16x1xf32, #tpu.memory_space<vmem>>, vector<16x1xf32>
      tpu.vector_store %arg8[%c0_29, %c0_30], %66 {strides = array<i32>} : memref<16x1xf32, #tpu.memory_space<vmem>>, vector<16x1xf32>,
    } else {
    }
    %c0 = arith.constant 0 : index
    %c0_1 = arith.constant 0 : index
    %3 = vector.load %arg2[%c0, %c0_1] : memref<16x32xf32, #tpu.memory_space<vmem>>, vector<16x32xf32>
    %c0_2 = arith.constant 0 : index
    %c0_3 = arith.constant 0 : index
    %4 = vector.load %arg3[%c0_2, %c0_3] : memref<16x1xi32, #tpu.memory_space<vmem>>, vector<16x1xi32>
    %c0_4 = arith.constant 0 : index
    %c0_5 = arith.constant 0 : index
    %5 = vector.load %arg4[%c0_4, %c0_5] : memref<16x1xf32, #tpu.memory_space<vmem>>, vector<16x1xf32>
    %c2_i32 = arith.constant 2 : i32
    %6 = arith.muli %arg0, %c2_i32 : i32
    %7 = arith.addi %6, %arg1 : i32
    %c16_i32 = arith.constant 16 : i32
    %8 = arith.muli %7, %c16_i32 : i32
    %9 = tpu.iota {dimensions = array<i32: 0>} : vector<16x1xi32>
    %10 = vector.broadcast %8 : i32 to vector<16x1xi32>
    %11 = arith.addi %10, %9 : vector<16x1xi32>
    %c50_i32 = arith.constant 50 : i32
    %12 = vector.broadcast %c50_i32 : i32 to vector<16x1xi32>
    %13 = arith.cmpi slt, %11, %12 : vector<16x1xi32>
    %c-100_i32 = arith.constant -100 : i32
    %14 = vector.broadcast %c-100_i32 : i32 to vector<16x1xi32>
    %15 = arith.cmpi ne, %4, %14 : vector<16x1xi32>
    %16 = arith.andi %13, %15 : vector<16x1xi1>
    %c0_i32_6 = arith.constant 0 : i32
    %17 = vector.broadcast %c0_i32_6 : i32 to vector<16x1xi32>
    %18 = arith.select %16, %4, %17 : vector<16x1xi1>, vector<16x1xi32>
    %c0_i32_7 = arith.constant 0 : i32
    %c31_i32 = arith.constant 31 : i32
    %19 = vector.broadcast %c0_i32_7 : i32 to vector<16x1xi32>
    %20 = arith.maxsi %19, %18 : vector<16x1xi32>
    %21 = vector.broadcast %c31_i32 : i32 to vector<16x1xi32>
    %22 = arith.minsi %21, %20 : vector<16x1xi32>
    %23 = tpu.iota {dimensions = array<i32: 1>} : vector<16x32xi32>
    %24 = vector.broadcast %22 : vector<16x1xi32> to vector<16x32xi32>
    %25 = arith.cmpi eq, %23, %24 : vector<16x32xi32>
    %cst = arith.constant dense<0xFF800000> : vector<16xf32>
    %26 = vector.multi_reduction <maximumf>, %3, %cst [1] : vector<16x32xf32> to vector<16xf32>
    %27 = vector.shape_cast %26 : vector<16xf32> to vector<16x1xf32>
    %28 = vector.broadcast %27 : vector<16x1xf32> to vector<16x32xf32>
    %29 = arith.subf %3, %28 : vector<16x32xf32>
    %30 = math.exp %29 : vector<16x32xf32>
    %cst_8 = arith.constant dense<0.000000e+00> : vector<16xf32>
    %31 = vector.multi_reduction <add>, %30, %cst_8 [1] : vector<16x32xf32> to vector<16xf32>
    %32 = vector.shape_cast %31 : vector<16xf32> to vector<16x1xf32>
    %cst_9 = arith.constant 0.000000e+00 : f32
    %33 = vector.broadcast %cst_9 : f32 to vector<16x32xf32>
    %34 = arith.select %25, %29, %33 : vector<16x32xi1>, vector<16x32xf32>
    %cst_10 = arith.constant dense<0.000000e+00> : vector<16xf32>
    %35 = vector.multi_reduction <add>, %34, %cst_10 [1] : vector<16x32xf32> to vector<16xf32>
    %36 = vector.shape_cast %35 : vector<16xf32> to vector<16x1xf32>
    %37 = math.log %32 : vector<16x1xf32>
    %38 = arith.subf %36, %37 : vector<16x1xf32>
    %39 = math.exp %38 : vector<16x1xf32>
    %cst_11 = arith.constant 0.000000e+00 : f32
    %40 = vector.broadcast %cst_11 : f32 to vector<16x1xf32>
    %41 = arith.subf %40, %5 : vector<16x1xf32>
    %42 = arith.mulf %41, %38 : vector<16x1xf32>
    %cst_12 = arith.constant 1.000000e+00 : f32
    %43 = vector.broadcast %cst_12 : f32 to vector<16x1xf32>
    %44 = arith.subf %43, %39 : vector<16x1xf32>
    %cst_13 = arith.constant 0.000000e+00 : f32
    %cst_14 = arith.constant 1.000000e+00 : f32
    %45 = vector.broadcast %cst_13 : f32 to vector<16x1xf32>
    %46 = arith.maximumf %45, %44 : vector<16x1xf32>
    %47 = vector.broadcast %cst_14 : f32 to vector<16x1xf32>
    %48 = arith.minimumf %47, %46 : vector<16x1xf32>
    %49 = arith.mulf %48, %48 : vector<16x1xf32>
    %50 = arith.mulf %49, %42 : vector<16x1xf32>
    %cst_15 = arith.constant 0.000000e+00 : f32
    %51 = vector.broadcast %cst_15 : f32 to vector<16x1xf32>
    %52 = arith.select %16, %50, %51 : vector<16x1xi1>, vector<16x1xf32>
    %c0_16 = arith.constant 0 : index
    %c0_17 = arith.constant 0 : index
    %53 = vector.load %arg7[%c0_16, %c0_17] : memref<16x1xf32, #tpu.memory_space<vmem>>, vector<16x1xf32>
    %54 = arith.addf %53, %52 : vector<16x1xf32>
    %c0_18 = arith.constant 0 : index
    %c0_19 = arith.constant 0 : index
    %55 = vector.load %arg7[%c0_18, %c0_19] : memref<16x1xf32, #tpu.memory_space<vmem>>, vector<16x1xf32>
    tpu.vector_store %arg7[%c0_18, %c0_19], %54 {strides = array<i32>} : memref<16x1xf32, #tpu.memory_space<vmem>>, vector<16x1xf32>,
    %c0_20 = arith.constant 0 : index
    %c0_21 = arith.constant 0 : index
    %56 = vector.load %arg8[%c0_20, %c0_21] : memref<16x1xf32, #tpu.memory_space<vmem>>, vector<16x1xf32>
    %57 = arith.extui %16 : vector<16x1xi1> to vector<16x1xi32>
    %58 = arith.sitofp %57 : vector<16x1xi32> to vector<16x1xf32>
    %59 = arith.addf %56, %58 : vector<16x1xf32>
    %c0_22 = arith.constant 0 : index
    %c0_23 = arith.constant 0 : index
    %60 = vector.load %arg8[%c0_22, %c0_23] : memref<16x1xf32, #tpu.memory_space<vmem>>, vector<16x1xf32>
    tpu.vector_store %arg8[%c0_22, %c0_23], %59 {strides = array<i32>} : memref<16x1xf32, #tpu.memory_space<vmem>>, vector<16x1xf32>,
    %c1_i32 = arith.constant 1 : i32
    %61 = arith.cmpi eq, %arg1, %c1_i32 : i32
    %62 = arith.extui %61 : i1 to i32
    %c0_i32_24 = arith.constant 0 : i32
    %63 = arith.cmpi ne, %62, %c0_i32_24 : i32
    scf.if %63 {
      %c0_25 = arith.constant 0 : index
      %c0_26 = arith.constant 0 : index
      %64 = vector.load %arg7[%c0_25, %c0_26] : memref<16x1xf32, #tpu.memory_space<vmem>>, vector<16x1xf32>
      %65 = vector.shape_cast %64 : vector<16x1xf32> to vector<1x16x1xf32>
      %cst_27 = arith.constant dense<0.000000e+00> : vector<1xf32>
      %66 = vector.multi_reduction <add>, %65, %cst_27 [1, 2] : vector<1x16x1xf32> to vector<1xf32>
      %67 = vector.shape_cast %66 : vector<1xf32> to vector<1x1x1xf32>
      %68 = vector.extract %67[0, 0, 0] : f32 from vector<1x1x1xf32>
      %69 = vector.broadcast %68 : f32 to vector<1x8x128xf32>
      %c0_28 = arith.constant 0 : index
      %c0_29 = arith.constant 0 : index
      %c0_30 = arith.constant 0 : index
      %70 = vector.load %arg5[%c0_28, %c0_29, %c0_30] : memref<1x8x128xf32, #tpu.memory_space<vmem>>, vector<1x8x128xf32>
      tpu.vector_store %arg5[%c0_28, %c0_29, %c0_30], %69 {strides = array<i32>} : memref<1x8x128xf32, #tpu.memory_space<vmem>>, vector<1x8x128xf32>,
      %c0_31 = arith.constant 0 : index
      %c0_32 = arith.constant 0 : index
      %71 = vector.load %arg8[%c0_31, %c0_32] : memref<16x1xf32, #tpu.memory_space<vmem>>, vector<16x1xf32>
      %72 = vector.shape_cast %71 : vector<16x1xf32> to vector<1x16x1xf32>
      %cst_33 = arith.constant dense<0.000000e+00> : vector<1xf32>
      %73 = vector.multi_reduction <add>, %72, %cst_33 [1, 2] : vector<1x16x1xf32> to vector<1xf32>
      %74 = vector.shape_cast %73 : vector<1xf32> to vector<1x1x1xf32>
      %75 = vector.extract %74[0, 0, 0] : f32 from vector<1x1x1xf32>
      %76 = vector.broadcast %75 : f32 to vector<1x8x128xf32>
      %c0_34 = arith.constant 0 : index
      %c0_35 = arith.constant 0 : index
      %c0_36 = arith.constant 0 : index
      %77 = vector.load %arg6[%c0_34, %c0_35, %c0_36] : memref<1x8x128xf32, #tpu.memory_space<vmem>>, vector<1x8x128xf32>
      tpu.vector_store %arg6[%c0_34, %c0_35, %c0_36], %76 {strides = array<i32>} : memref<1x8x128xf32, #tpu.memory_space<vmem>>, vector<1x8x128xf32>,
    } else {
    }
    return
  }
  func.func @transform_0(%arg0: i32, %arg1: i32) -> (i32, i32) {
    %c2_i32 = arith.constant 2 : i32
    %0 = arith.muli %arg0, %c2_i32 : i32
    %1 = arith.addi %0, %arg1 : i32
    %c3_i32 = arith.constant 3 : i32
    %2 = arith.minsi %1, %c3_i32 : i32
    %c0_i32 = arith.constant 0 : i32
    %c0_i32_0 = arith.constant 0 : i32
    return %2, %c0_i32 : i32, i32
  }
  func.func @transform_1(%arg0: i32, %arg1: i32) -> (i32, i32) {
    %c2_i32 = arith.constant 2 : i32
    %0 = arith.muli %arg0, %c2_i32 : i32
    %1 = arith.addi %0, %arg1 : i32
    %c3_i32 = arith.constant 3 : i32
    %2 = arith.minsi %1, %c3_i32 : i32
    %c0_i32 = arith.constant 0 : i32
    %c0_i32_0 = arith.constant 0 : i32
    return %2, %c0_i32 : i32, i32
  }
  func.func @transform_2(%arg0: i32, %arg1: i32) -> (i32, i32) {
    %c2_i32 = arith.constant 2 : i32
    %0 = arith.muli %arg0, %c2_i32 : i32
    %1 = arith.addi %0, %arg1 : i32
    %c3_i32 = arith.constant 3 : i32
    %2 = arith.minsi %1, %c3_i32 : i32
    %c0_i32 = arith.constant 0 : i32
    %c0_i32_0 = arith.constant 0 : i32
    return %2, %c0_i32 : i32, i32
  }
  func.func @transform_3(%arg0: i32, %arg1: i32) -> (i32, i32, i32) {
    %c0_i32 = arith.constant 0 : i32
    %c0_i32_0 = arith.constant 0 : i32
    %c0_i32_1 = arith.constant 0 : i32
    return %arg0, %c0_i32, %c0_i32_0 : i32, i32, i32
  }
  func.func @transform_4(%arg0: i32, %arg1: i32) -> (i32, i32, i32) {
    %c0_i32 = arith.constant 0 : i32
    %c0_i32_0 = arith.constant 0 : i32
    %c0_i32_1 = arith.constant 0 : i32
    return %arg0, %c0_i32, %c0_i32_0 : i32, i32, i32
  }
}

</mosaic_0001>

<llo_original>
// kernel: tpu_custom_call.1
$region0: #{tpu_custom_call.1}
  #allocation0 [shape = 'u32[]', space=smem, size = 0x4, offset = 0x4, fixed_abs, tag = 'smem constant byte address 0x4 - core index']
  #allocation1 [shape = 'u32[144,128]{1,0:T(1,128)}', space=vmem, size = 0x12000, scoped, tag = 'internal scratch']
  #allocation2 [shape = 'f32[16,1]{1,0:T(8,128)}', space=vmem, size = 0x2000, scoped, tag = 'scratch operand']
  #allocation3 [shape = 'f32[16,1]{1,0:T(8,128)}', space=vmem, size = 0x2000, scoped, tag = 'scratch operand']
  %s0 = inlined_call_operand.vmem [shape: f32[50,32], index: 0, kind: input, shape index: {}]
  %s1 = inlined_call_operand.vmem [shape: s32[50,1], index: 1, kind: input, shape index: {}]
  %s2 = inlined_call_operand.vmem [shape: f32[50,1], index: 2, kind: input, shape index: {}]
  %s3 = inlined_call_operand.hbm [shape: f32[2,8,128], index: 3, kind: output, shape index: {0}]
  %s4 = inlined_call_operand.hbm [shape: f32[2,8,128], index: 4, kind: output, shape index: {1}]
  %5 = xla_tuple %s3, %s4
  %s6 = sld [smem:[#allocation0]]
  $region61: #{tpu_custom_call.1} parent=0
    _
  %s8 = ssub.s32 1, %s6
  %s9 = scalar_select 0, %s8, %s6
  $region1: #{tpu_custom_call.1} parent=0
    #allocation4 [shape = 'u8[8192]{0}', space=vmem, size = 0x2000, scoped, tag = 'output window, operand 0']
    #allocation5 [shape = 's32[2]{0}', space=sflag, size = 0x8, scoped, tag = 'scoped memory for tpu_custom_call.1']
    #allocation6 [shape = 'u8[8192]{0}', space=vmem, size = 0x2000, scoped, tag = 'output window, operand 1']
    #allocation7 [shape = 's32[2]{0}', space=sflag, size = 0x8, scoped, tag = 'scoped memory for tpu_custom_call.1']
    %10 = vsyncpa [#allocation5], 0
    %s11 = scalar_lea.sflag [#allocation5], 1
    %12 = vsyncpa %s11, 0
    %13 = vsyncpa [#allocation7], 0
    %s14 = scalar_lea.sflag [#allocation7], 1
    %15 = vsyncpa %s14, 0
    loop: start=0, step=1, limit=6
    $region2: #{tpu_custom_call.1} parent=1 // loop_pre_header
      _
    $region3: #{tpu_custom_call.1} parent=1 // loop_header
      %s17 = sphi 0, %s21
      %p18 = scmp.ge.s32.totalorder %s17, 6
      %s24 = sphi 0, %s36
      %s25 = sphi 0, %s32
      %s26 = sphi 0, %s24
      %s27 = sphi 0, %s25
      %s28 = sphi 0, %s26
      %s29 = sphi 0, %s27
      %s47 = sphi 0, %s49
      %s50 = sphi 0, %s47
      %s51 = sphi 0, %s50
      %s67 = sphi 0, %s51
      %s81 = sphi 0, %s83
      %s84 = sphi 0, %s81
      %s85 = sphi 0, %s84
      %s101 = sphi 0, %s85
      %s115 = sphi 0, %s117
      %s118 = sphi 0, %s115
      %s119 = sphi 0, %s118
      %s135 = sphi 0, %s119
      %s141 = sphi 0, %s143
      %s144 = sphi 0, %s141
      %s145 = sphi 0, %s144
      %s161 = sphi 0, %s145
      %s167 = sphi 0, %s169
      %s170 = sphi 0, %s167
      %s171 = sphi 0, %s170
      %s187 = sphi 0, %s171
    $region4: #{tpu_custom_call.1} parent=1 // loop_header_branch
      %20 = sbr.rel (%p18) target = $region8
    $region5: #{tpu_custom_call.1} parent=1 // loop_body
      %s22 = ssub.s32 %s17, 1
      %s23 = ssub.s32 %s17, 2
      %s30 = sadd.s32 1, %s25
      %p31 = scmp.ge.s32.totalorder %s30, 2
      %s32 = scalar_select %p31, 0, %s30
      %s33 = sadd.s32 1, %s24
      %s34 = scalar_select %p31, %s33, %s24
      %p35 = scmp.ge.s32.totalorder %s34, 2
      %s36 = scalar_select %p35, 0, %s34
      %s37 = smul.u32 %s24, 2
      %s38 = sadd.s32 %s37, %s25
      %p39 = scmp.lt.s32.totalorder %s38, 3
      %s40 = scalar_select %p39, %s38, 3
      %s41 = smul.u32 %s36, 2
      %s42 = sadd.s32 %s41, %s32
      %p43 = scmp.lt.s32.totalorder %s42, 3
      %s44 = scalar_select %p43, %s42, 3
      %s45 = ssub.s32 %s40, %s44
      %p46 = scmp.eq.s32.totalorder %s45, 0
      %s48 = sadd.s32 %s47, 1
      %s49 = scalar_select %p46, %s47, %s48
      %p52 = pneg %p46
      %p53 = scmp.eq.s32.totalorder %s17, 3
      %p54 = por %p52, %p53
      %p55 = scmp.ne.s32.totalorder %s47, %s50
      %p56 = scmp.eq.s32.totalorder %s17, 0
      %p57 = por %p55, %p56
      %p58 = scmp.ne.s32.totalorder %s47, %s50
      %p59 = scmp.eq.s32.totalorder %s22, 3
      %p60 = por %p58, %p59
      %p61 = scmp.ne.s32.totalorder %s50, %s51
      %p62 = scmp.eq.s32.totalorder %s22, 0
      %p63 = por %p61, %p62
      %p64 = scmp.ne.s32.totalorder %s50, %s51
      %p65 = scmp.eq.s32.totalorder %s23, 3
      %p66 = por %p64, %p65
      %p68 = scmp.ne.s32.totalorder %s51, %s67
      %p69 = scmp.eq.s32.totalorder %s23, 0
      %p70 = por %p68, %p69
      %s71 = smul.u32 %s24, 2
      %s72 = sadd.s32 %s71, %s25
      %p73 = scmp.lt.s32.totalorder %s72, 3
      %s74 = scalar_select %p73, %s72, 3
      %s75 = smul.u32 %s36, 2
      %s76 = sadd.s32 %s75, %s32
      %p77 = scmp.lt.s32.totalorder %s76, 3
      %s78 = scalar_select %p77, %s76, 3
      %s79 = ssub.s32 %s74, %s78
      %p80 = scmp.eq.s32.totalorder %s79, 0
      %s82 = sadd.s32 %s81, 1
      %s83 = scalar_select %p80, %s81, %s82
      %p86 = pneg %p80
      %p87 = scmp.eq.s32.totalorder %s17, 3
      %p88 = por %p86, %p87
      %p89 = scmp.ne.s32.totalorder %s81, %s84
      %p90 = scmp.eq.s32.totalorder %s17, 0
      %p91 = por %p89, %p90
      %p92 = scmp.ne.s32.totalorder %s81, %s84
      %p93 = scmp.eq.s32.totalorder %s22, 3
      %p94 = por %p92, %p93
      %p95 = scmp.ne.s32.totalorder %s84, %s85
      %p96 = scmp.eq.s32.totalorder %s22, 0
      %p97 = por %p95, %p96
      %p98 = scmp.ne.s32.totalorder %s84, %s85
      %p99 = scmp.eq.s32.totalorder %s23, 3
      %p100 = por %p98, %p99
      %p102 = scmp.ne.s32.totalorder %s85, %s101
      %p103 = scmp.eq.s32.totalorder %s23, 0
      %p104 = por %p102, %p103
      %s105 = smul.u32 %s24, 2
      %s106 = sadd.s32 %s105, %s25
      %p107 = scmp.lt.s32.totalorder %s106, 3
      %s108 = scalar_select %p107, %s106, 3
      %s109 = smul.u32 %s36, 2
      %s110 = sadd.s32 %s109, %s32
      %p111 = scmp.lt.s32.totalorder %s110, 3
      %s112 = scalar_select %p111, %s110, 3
      %s113 = ssub.s32 %s108, %s112
      %p114 = scmp.eq.s32.totalorder %s113, 0
      %s116 = sadd.s32 %s115, 1
      %s117 = scalar_select %p114, %s115, %s116
      %p120 = pneg %p114
      %p121 = scmp.eq.s32.totalorder %s17, 3
      %p122 = por %p120, %p121
      %p123 = scmp.ne.s32.totalorder %s115, %s118
      %p124 = scmp.eq.s32.totalorder %s17, 0
      %p125 = por %p123, %p124
      %p126 = scmp.ne.s32.totalorder %s115, %s118
      %p127 = scmp.eq.s32.totalorder %s22, 3
      %p128 = por %p126, %p127
      %p129 = scmp.ne.s32.totalorder %s118, %s119
      %p130 = scmp.eq.s32.totalorder %s22, 0
      %p131 = por %p129, %p130
      %p132 = scmp.ne.s32.totalorder %s118, %s119
      %p133 = scmp.eq.s32.totalorder %s23, 3
      %p134 = por %p132, %p133
      %p136 = scmp.ne.s32.totalorder %s119, %s135
      %p137 = scmp.eq.s32.totalorder %s23, 0
      %p138 = por %p136, %p137
      %s139 = ssub.s32 %s24, %s36
      %p140 = scmp.eq.s32.totalorder %s139, 0
      %s142 = sadd.s32 %s141, 1
      %s143 = scalar_select %p140, %s141, %s142
      %p146 = pneg %p140
      %p147 = scmp.eq.s32.totalorder %s17, 3
      %p148 = por %p146, %p147
      %p149 = scmp.ne.s32.totalorder %s141, %s144
      %p150 = scmp.eq.s32.totalorder %s17, 0
      %p151 = por %p149, %p150
      %p152 = scmp.ne.s32.totalorder %s141, %s144
      %p153 = scmp.eq.s32.totalorder %s22, 3
      %p154 = por %p152, %p153
      %p155 = scmp.ne.s32.totalorder %s144, %s145
      %p156 = scmp.eq.s32.totalorder %s22, 0
      %p157 = por %p155, %p156
      %p158 = scmp.ne.s32.totalorder %s144, %s145
      %p159 = scmp.eq.s32.totalorder %s23, 3
      %p160 = por %p158, %p159
      %p162 = scmp.ne.s32.totalorder %s145, %s161
      %p163 = scmp.eq.s32.totalorder %s23, 0
      %p164 = por %p162, %p163
      %s165 = ssub.s32 %s24, %s36
      %p166 = scmp.eq.s32.totalorder %s165, 0
      %s168 = sadd.s32 %s167, 1
      %s169 = scalar_select %p166, %s167, %s168
      %p172 = pneg %p166
      %p173 = scmp.eq.s32.totalorder %s17, 3
      %p174 = por %p172, %p173
      %p175 = scmp.ne.s32.totalorder %s167, %s170
      %p176 = scmp.eq.s32.totalorder %s17, 0
      %p177 = por %p175, %p176
      %p178 = scmp.ne.s32.totalorder %s167, %s170
      %p179 = scmp.eq.s32.totalorder %s22, 3
      %p180 = por %p178, %p179
      %p181 = scmp.ne.s32.totalorder %s170, %s171
      %p182 = scmp.eq.s32.totalorder %s22, 0
      %p183 = por %p181, %p182
      %p184 = scmp.ne.s32.totalorder %s170, %s171
      %p185 = scmp.eq.s32.totalorder %s23, 3
      %p186 = por %p184, %p185
      %p188 = scmp.ne.s32.totalorder %s171, %s187
      %p189 = scmp.eq.s32.totalorder %s23, 0
      %p190 = por %p188, %p189
      %p191 = scmp.le.s32.totalorder 1, %s17
      %p192 = scmp.lt.s32.totalorder %s17, 5
      %p193 = pnand %p191, %p192
      %p194 = pneg %p193
      // Predicated region
      $region9: #{tpu_custom_call.1} parent=5 // pred_check
        _
      $region10: #{tpu_custom_call.1} parent=5 // pred_check_branch
        %196 = sbr.rel (%p193) target = $region12
      $region11: #{tpu_custom_call.1} parent=5 // pred_region
        %s197 = ssub.s32 %s17, 1
      $region12: #{tpu_custom_call.1} parent=5 // pred_fallthru
        _
      %p198 = scmp.lt.s32.totalorder %s17, 4
      // Predicated region
      $region13: #{tpu_custom_call.1} parent=5 // pred_check
        %p199 = pneg %p198
      $region14: #{tpu_custom_call.1} parent=5 // pred_check_branch
        %201 = sbr.rel (%p199) target = $region16
      $region15: #{tpu_custom_call.1} parent=5 // pred_region
        // Predicated region
        $region17: #{tpu_custom_call.1} parent=15 // pred_check
          %p202 = pneg %p57
        $region18: #{tpu_custom_call.1} parent=15 // pred_check_branch
          %204 = sbr.rel (%p202) target = $region20
        $region19: #{tpu_custom_call.1} parent=15 // pred_region
          %s205 = smul.u32 %s24, 2
          %s206 = sadd.s32 %s205, %s25
          %p207 = scmp.lt.s32.totalorder %s206, 3
          %s208 = scalar_select %p207, %s206, 3
          %s209 = smul.u32 2, %s208
          %s210 = ssub.s32 7, %s209
          %p211 = scmp.lt.s32.totalorder %s210, 2
          %s212 = scalar_select %p211, %s210, 2
          %s213 = smul.u32 128, %s212
          %p214 = scmp.lt.s32.totalorder %s209, 6
          %s215 = scalar_select %p214, %s209, 6
          %s216 = smul.addr %s215, 8
          %s217 = scalar_lea.vmem %s0, %s216
          %s218 = smul.u32 %s24, 2
          %s219 = sadd.s32 %s218, %s25
          %p220 = scmp.lt.s32.totalorder %s219, 3
          %s221 = scalar_select %p220, %s219, 3
          %s222 = smul.u32 2, %s221
          %s223 = ssub.s32 7, %s222
          %p224 = scmp.lt.s32.totalorder %s223, 2
          %s225 = scalar_select %p224, %s223, 2
          %s226 = smul.u32 128, %s225
        $region20: #{tpu_custom_call.1} parent=15 // pred_fallthru
          _
        // Predicated region
        $region21: #{tpu_custom_call.1} parent=15 // pred_check
          %p227 = pneg %p91
        $region22: #{tpu_custom_call.1} parent=15 // pred_check_branch
          %229 = sbr.rel (%p227) target = $region24
        $region23: #{tpu_custom_call.1} parent=15 // pred_region
          %s230 = smul.u32 %s24, 2
          %s231 = sadd.s32 %s230, %s25
          %p232 = scmp.lt.s32.totalorder %s231, 3
          %s233 = scalar_select %p232, %s231, 3
          %s234 = smul.u32 2, %s233
          %s235 = ssub.s32 7, %s234
          %p236 = scmp.lt.s32.totalorder %s235, 2
          %s237 = scalar_select %p236, %s235, 2
          %s238 = smul.u32 128, %s237
          %p239 = scmp.lt.s32.totalorder %s234, 6
          %s240 = scalar_select %p239, %s234, 6
          %s241 = smul.addr %s240, 8
          %s242 = scalar_lea.vmem %s1, %s241
          %s243 = smul.u32 %s24, 2
          %s244 = sadd.s32 %s243, %s25
          %p245 = scmp.lt.s32.totalorder %s244, 3
          %s246 = scalar_select %p245, %s244, 3
          %s247 = smul.u32 2, %s246
          %s248 = ssub.s32 7, %s247
          %p249 = scmp.lt.s32.totalorder %s248, 2
          %s250 = scalar_select %p249, %s248, 2
          %s251 = smul.u32 128, %s250
        $region24: #{tpu_custom_call.1} parent=15 // pred_fallthru
          _
        // Predicated region
        $region25: #{tpu_custom_call.1} parent=15 // pred_check
          %p252 = pneg %p125
        $region26: #{tpu_custom_call.1} parent=15 // pred_check_branch
          %254 = sbr.rel (%p252) target = $region28
        $region27: #{tpu_custom_call.1} parent=15 // pred_region
          %s255 = smul.u32 %s24, 2
          %s256 = sadd.s32 %s255, %s25
          %p257 = scmp.lt.s32.totalorder %s256, 3
          %s258 = scalar_select %p257, %s256, 3
          %s259 = smul.u32 2, %s258
          %s260 = ssub.s32 7, %s259
          %p261 = scmp.lt.s32.totalorder %s260, 2
          %s262 = scalar_select %p261, %s260, 2
          %s263 = smul.u32 128, %s262
          %p264 = scmp.lt.s32.totalorder %s259, 6
          %s265 = scalar_select %p264, %s259, 6
          %s266 = smul.addr %s265, 8
          %s267 = scalar_lea.vmem %s2, %s266
          %s268 = smul.u32 %s24, 2
          %s269 = sadd.s32 %s268, %s25
          %p270 = scmp.lt.s32.totalorder %s269, 3
          %s271 = scalar_select %p270, %s269, 3
          %s272 = smul.u32 2, %s271
          %s273 = ssub.s32 7, %s272
          %p274 = scmp.lt.s32.totalorder %s273, 2
          %s275 = scalar_select %p274, %s273, 2
          %s276 = smul.u32 128, %s275
        $region28: #{tpu_custom_call.1} parent=15 // pred_fallthru
          _
      $region16: #{tpu_custom_call.1} parent=5 // pred_fallthru
        _
      %p277 = scmp.le.s32.totalorder 1, %s17
      %p278 = scmp.lt.s32.totalorder %s17, 5
      %p279 = pnand %p277, %p278
      %p280 = pneg %p279
      // Predicated region
      $region29: #{tpu_custom_call.1} parent=5 // pred_check
        _
      $region30: #{tpu_custom_call.1} parent=5 // pred_check_branch
        %282 = sbr.rel (%p279) target = $region32
      $region31: #{tpu_custom_call.1} parent=5 // pred_region
        %s283 = ssub.s32 %s17, 1
        %s284 = smul.u32 %s26, 2
        %s285 = sadd.s32 %s284, %s27
        %p286 = scmp.lt.s32.totalorder %s285, 3
        %s287 = scalar_select %p286, %s285, 3
        %s288 = smul.u32 2, %s287
        %s289 = ssub.s32 7, %s288
        %p290 = scmp.lt.s32.totalorder %s289, 2
        %s291 = scalar_select %p290, %s289, 2
        %s292 = smul.u32 128, %s291
        %p293 = scmp.lt.s32.totalorder %s288, 6
        %s294 = scalar_select %p293, %s288, 6
        %s295 = smul.addr %s294, 8
        %s296 = scalar_lea.vmem %s0, %s295
        %p297 = pneg %p63
        %p298 = pneg %p60
        %s299 = smul.u32 %s26, 2
        %s300 = sadd.s32 %s299, %s27
        %p301 = scmp.lt.s32.totalorder %s300, 3
        %s302 = scalar_select %p301, %s300, 3
        %s303 = smul.u32 2, %s302
        %s304 = ssub.s32 7, %s303
        %p305 = scmp.lt.s32.totalorder %s304, 2
        %s306 = scalar_select %p305, %s304, 2
        %s307 = smul.u32 128, %s306
        %p308 = scmp.lt.s32.totalorder %s303, 6
        %s309 = scalar_select %p308, %s303, 6
        %s310 = smul.addr %s309, 8
        %s311 = scalar_lea.vmem %s1, %s310
        %p312 = pneg %p97
        %p313 = pneg %p94
        %s314 = smul.u32 %s26, 2
        %s315 = sadd.s32 %s314, %s27
        %p316 = scmp.lt.s32.totalorder %s315, 3
        %s317 = scalar_select %p316, %s315, 3
        %s318 = smul.u32 2, %s317
        %s319 = ssub.s32 7, %s318
        %p320 = scmp.lt.s32.totalorder %s319, 2
        %s321 = scalar_select %p320, %s319, 2
        %s322 = smul.u32 128, %s321
        %p323 = scmp.lt.s32.totalorder %s318, 6
        %s324 = scalar_select %p323, %s318, 6
        %s325 = smul.addr %s324, 8
        %s326 = scalar_lea.vmem %s2, %s325
        %p327 = pneg %p131
        %p328 = pneg %p128
        %p329 = pneg %p157
        %p330 = pneg %p154
        %s331 = sand.u32 %s144, 1
        %s332 = scalar_lea.sflag [#allocation5], %s331
        %s333 = sand.u32 %s144, 1
        %s334 = smul.addr %s333, 8
        %s335 = scalar_lea.vmem [#allocation4], %s334
        %p336 = pneg %p183
        %p337 = pneg %p180
        %s338 = sand.u32 %s170, 1
        %s339 = scalar_lea.sflag [#allocation7], %s338
        %s340 = sand.u32 %s170, 1
        %s341 = smul.addr %s340, 8
        %s342 = scalar_lea.vmem [#allocation6], %s341
        %s343 = smul.u32 %s26, 2
        %s344 = sadd.s32 %s343, %s27
        %p345 = scmp.lt.s32.totalorder %s344, 3
        %s346 = scalar_select %p345, %s344, 3
        %s347 = smul.u32 2, %s346
        %s348 = ssub.s32 7, %s347
        %p349 = scmp.lt.s32.totalorder %s348, 2
        %s350 = scalar_select %p349, %s348, 2
        %s351 = smul.u32 128, %s350
        %p352 = scmp.lt.s32.totalorder %s347, 6
        %s353 = scalar_select %p352, %s347, 6
        %s354 = smul.addr %s353, 8
        %s355 = scalar_lea.vmem %s0, %s354
        %s356 = smul.u32 %s26, 2
        %s357 = sadd.s32 %s356, %s27
        %p358 = scmp.lt.s32.totalorder %s357, 3
        %s359 = scalar_select %p358, %s357, 3
        %s360 = smul.u32 2, %s359
        %s361 = ssub.s32 7, %s360
        %p362 = scmp.lt.s32.totalorder %s361, 2
        %s363 = scalar_select %p362, %s361, 2
        %s364 = smul.u32 128, %s363
        %s365 = smul.u32 %s26, 2
        %s366 = sadd.s32 %s365, %s27
        %p367 = scmp.lt.s32.totalorder %s366, 3
        %s368 = scalar_select %p367, %s366, 3
        %s369 = smul.u32 2, %s368
        %s370 = ssub.s32 7, %s369
        %p371 = scmp.lt.s32.totalorder %s370, 2
        %s372 = scalar_select %p371, %s370, 2
        %s373 = smul.u32 128, %s372
        %p374 = scmp.lt.s32.totalorder %s369, 6
        %s375 = scalar_select %p374, %s369, 6
        %s376 = smul.addr %s375, 8
        %s377 = scalar_lea.vmem %s1, %s376
        %s378 = smul.u32 %s26, 2
        %s379 = sadd.s32 %s378, %s27
        %p380 = scmp.lt.s32.totalorder %s379, 3
        %s381 = scalar_select %p380, %s379, 3
        %s382 = smul.u32 2, %s381
        %s383 = ssub.s32 7, %s382
        %p384 = scmp.lt.s32.totalorder %s383, 2
        %s385 = scalar_select %p384, %s383, 2
        %s386 = smul.u32 128, %s385
        %s387 = smul.u32 %s26, 2
        %s388 = sadd.s32 %s387, %s27
        %p389 = scmp.lt.s32.totalorder %s388, 3
        %s390 = scalar_select %p389, %s388, 3
        %s391 = smul.u32 2, %s390
        %s392 = ssub.s32 7, %s391
        %p393 = scmp.lt.s32.totalorder %s392, 2
        %s394 = scalar_select %p393, %s392, 2
        %s395 = smul.u32 128, %s394
        %p396 = scmp.lt.s32.totalorder %s391, 6
        %s397 = scalar_select %p396, %s391, 6
        %s398 = smul.addr %s397, 8
        %s399 = scalar_lea.vmem %s2, %s398
        %s400 = smul.u32 %s26, 2
        %s401 = sadd.s32 %s400, %s27
        %p402 = scmp.lt.s32.totalorder %s401, 3
        %s403 = scalar_select %p402, %s401, 3
        %s404 = smul.u32 2, %s403
        %s405 = ssub.s32 7, %s404
        %p406 = scmp.lt.s32.totalorder %s405, 2
        %s407 = scalar_select %p406, %s405, 2
        %s408 = smul.u32 128, %s407
        %p409 = scmp.eq.s32.totalorder %s27, 0
        // Predicated region
        $region33: #{tpu_custom_call.1} parent=31 // pred_check
          %p410 = pneg %p409
        $region34: #{tpu_custom_call.1} parent=31 // pred_check_branch
          %412 = sbr.rel (%p410) target = $region36
        $region35: #{tpu_custom_call.1} parent=31 // pred_region
          %vm413 = vcmask 7168
          %414 = vst.msk [vmem:[#allocation2] sm:$0xff] %vm413, 0.0
          %415 = vst.msk [vmem:[#allocation2 + $0x8] sm:$0xff] %vm413, 0.0
          %416 = vst.msk [vmem:[#allocation3] sm:$0xff] %vm413, 0.0
          %417 = vst.msk [vmem:[#allocation3 + $0x8] sm:$0xff] %vm413, 0.0
        $region36: #{tpu_custom_call.1} parent=31 // pred_fallthru
          _
        %v418 = vld [vmem:[%s355] sm:$0xff]
        %v419 = vld [vmem:[%s355 + $0x8] sm:$0xff]
        %v420 = vld [vmem:[%s377] sm:$0xff]
        %v421 = vld [vmem:[%s377 + $0x8] sm:$0xff]
        %v422 = vld [vmem:[%s399] sm:$0xff]
        %v423 = vld [vmem:[%s399 + $0x8] sm:$0xff]
        %s424 = smul.u32 %s26, 2
        %s425 = sadd.s32 %s424, %s27
        %s426 = smul.u32 %s425, 16
        %v427 = vlaneseq
        %v428 = vshrl.u32 %v427, 7
        %v429 = vadd.s32 %v428, 8
        %v430 = vstv %s426
        %v431 = vadd.s32 %v430, %v428
        %v432 = vadd.s32 %v430, %v429
        %vm433 = vcmp.lt.s32.totalorder %v431, 50
        %vm434 = vcmp.lt.s32.totalorder %v432, 50
        %vm435 = vcmp.ne.s32.totalorder %v420, 4294967196
        %vm436 = vcmp.ne.s32.totalorder %v421, 4294967196
        %vm437 = vmand %vm433, %vm435
        %vm438 = vmand %vm434, %vm436
        %v439 = vsel %vm437, %v420, 0
        %v440 = vsel %vm438, %v421, 0
        %vm441 = vcmp.gt.s32.totalorder %v439, 0
        %v442 = vsel %vm441, %v439, 0
        %vm443 = vcmp.gt.s32.totalorder %v440, 0
        %v444 = vsel %vm443, %v440, 0
        %vm445 = vcmp.lt.s32.totalorder %v442, 31
        %v446 = vsel %vm445, %v442, 31
        %vm447 = vcmp.lt.s32.totalorder %v444, 31
        %v448 = vsel %vm447, %v444, 31
        %v449 = vlaneseq
        %v450 = vand.u32 %v449, 127
        %451 = vset.pattern.permute.xlu0 0
        %452 = vperm.xlu0 %451, %v446
        %v453 = vpop.permute.xlu0 %452
        %454 = vset.pattern.permute.xlu0 0
        %455 = vperm.xlu0 %454, %v448
        %v456 = vpop.permute.xlu0 %455
        %vm457 = vcmp.eq.s32.totalorder %v450, %v453
        %vm458 = vcmp.eq.s32.totalorder %v450, %v456
        %vm459 = vcmask 261120
        %v460 = vsel %vm459, %v418, -inf
        %461 = vmax.xlane.f32.xlu0 %v460
        %v462 = vpop.xlane.xlu0 %461
        %v463 = vsel %vm459, %v419, -inf
        %464 = vmax.xlane.f32.xlu0 %v463
        %v465 = vpop.xlane.xlu0 %464
        %v466 = vsub.f32 %v418, %v462
        %v467 = vsub.f32 %v419, %v465
        %v468 = vmul.f32 %v466, 1.442695
        %v469 = vpow.pop %v468
        %v470 = vmul.f32 %v467, 1.442695
        %v471 = vpow.pop %v470
        %v472 = vsel %vm459, %v469, 0.0
        %473 = vadd.xlane.f32.xlu0 %v472
        %v474 = vpop.xlane.xlu0 %473
        %v475 = vsel %vm459, %v471, 0.0
        %476 = vadd.xlane.f32.xlu0 %v475
        %v477 = vpop.xlane.xlu0 %476
        %v478 = vsel %vm457, %v466, 0.0
        %v479 = vsel %vm458, %v467, 0.0
        %v480 = vsel %vm459, %v478, 0.0
        %481 = vadd.xlane.f32.xlu0 %v480
        %v482 = vpop.xlane.xlu0 %481
        %v483 = vsel %vm459, %v479, 0.0
        %484 = vadd.xlane.f32.xlu0 %v483
        %v485 = vpop.xlane.xlu0 %484
        %v486 = vlog2.pop %v474
        %v487 = vmul.f32 %v486, 0.6931472
        %v488 = vlog2.pop %v477
        %v489 = vmul.f32 %v488, 0.6931472
        %v490 = vsub.f32 %v482, %v487
        %v491 = vsub.f32 %v485, %v489
        %v492 = vmul.f32 %v490, 1.442695
        %v493 = vpow.pop %v492
        %v494 = vmul.f32 %v491, 1.442695
        %v495 = vpow.pop %v494
        %v496 = vsub.f32 0.0, %v422
        %v497 = vsub.f32 0.0, %v423
        %v498 = vmul.f32 %v496, %v490
        %v499 = vmul.f32 %v497, %v491
        %v500 = vsub.f32 1.0, %v493
        %v501 = vsub.f32 1.0, %v495
        %v502 = vmax.f32 %v500, 0.0
        %v503 = vmax.f32 %v501, 0.0
        %v504 = vmin.f32 %v502, 1.0
        %v505 = vmin.f32 %v503, 1.0
        %v506 = vmul.f32 %v504, %v504
        %v507 = vmul.f32 %v505, %v505
        %v508 = vmul.f32 %v506, %v498
        %v509 = vmul.f32 %v507, %v499
        %v510 = vsel %vm437, %v508, 0.0
        %v511 = vsel %vm438, %v509, 0.0
        %v512 = vld [vmem:[#allocation2] sm:$0xff]
        %v513 = vld [vmem:[#allocation2 + $0x8] sm:$0xff]
        %v514 = vadd.f32 %v512, %v510
        %v515 = vadd.f32 %v513, %v511
        %vm516 = vcmask 7168
        %517 = vst.msk [vmem:[#allocation2] sm:$0xff] %vm516, %v514
        %518 = vst.msk [vmem:[#allocation2 + $0x8] sm:$0xff] %vm516, %v515
        %v519 = vld [vmem:[#allocation3] sm:$0xff]
        %v520 = vld [vmem:[#allocation3 + $0x8] sm:$0xff]
        %v521 = vsel %vm437, 1, 0
        %v522 = vsel %vm438, 1, 0
        %v523 = vcvt.s32.f32 %v521
        %v524 = vcvt.s32.f32 %v522
        %v525 = vadd.f32 %v519, %v523
        %v526 = vadd.f32 %v520, %v524
        %527 = vst.msk [vmem:[#allocation3] sm:$0xff] %vm516, %v525
        %528 = vst.msk [vmem:[#allocation3 + $0x8] sm:$0xff] %vm516, %v526
        %p529 = scmp.eq.s32.totalorder %s27, 1
        // Predicated region
        $region37: #{tpu_custom_call.1} parent=31 // pred_check
          %p530 = pneg %p529
        $region38: #{tpu_custom_call.1} parent=31 // pred_check_branch
          %532 = sbr.rel (%p530) target = $region40
        $region39: #{tpu_custom_call.1} parent=31 // pred_region
          %v533 = vld [vmem:[#allocation2] sm:$0xff]
          %v534 = vld [vmem:[#allocation2 + $0x8] sm:$0xff]
          %v535 = vsel %vm516, %v533, 0.0
          %v536 = vsel %vm516, %v534, 0.0
          %v537 = vadd.f32 %v535, %v536
          %538 = vadd.xlane.f32.xlu0 %v537
          %v539 = vpop.xlane.xlu0 %538
          %v540 = vrot.slane %v539, 4
          %v541 = vadd.f32 %v539, %v540
          %v542 = vrot.slane %v541, 2
          %v543 = vadd.f32 %v541, %v542
          %v544 = vrot.slane %v543, 1
          %v545 = vadd.f32 %v543, %v544
          %s546 = vtos %v545
          %v547 = vstv %s546
          %548 = vst [vmem:[%s335] sm:$0xff] %v547
          %v549 = vld [vmem:[#allocation3] sm:$0xff]
          %v550 = vld [vmem:[#allocation3 + $0x8] sm:$0xff]
          %v551 = vsel %vm516, %v549, 0.0
          %v552 = vsel %vm516, %v550, 0.0
          %v553 = vadd.f32 %v551, %v552
          %554 = vadd.xlane.f32.xlu0 %v553
          %v555 = vpop.xlane.xlu0 %554
          %v556 = vrot.slane %v555, 4
          %v557 = vadd.f32 %v555, %v556
          %v558 = vrot.slane %v557, 2
          %v559 = vadd.f32 %v557, %v558
          %v560 = vrot.slane %v559, 1
          %v561 = vadd.f32 %v559, %v560
          %s562 = vtos %v561
          %v563 = vstv %s562
          %564 = vst [vmem:[%s342] sm:$0xff] %v563
        $region40: #{tpu_custom_call.1} parent=31 // pred_fallthru
          _
        %s565 = sand.u32 %s144, 1
        %s566 = scalar_lea.sflag [#allocation5], %s565
        %s567 = sand.u32 %s144, 1
        %s568 = smul.addr %s567, 8
        %s569 = scalar_lea.vmem [#allocation4], %s568
        %s570 = sand.u32 %s170, 1
        %s571 = scalar_lea.sflag [#allocation7], %s570
        %s572 = sand.u32 %s170, 1
        %s573 = smul.addr %s572, 8
        %s574 = scalar_lea.vmem [#allocation6], %s573
        // Predicated region
        $region41: #{tpu_custom_call.1} parent=31 // pred_check
          %p575 = pneg %p154
        $region42: #{tpu_custom_call.1} parent=31 // pred_check_branch
          %577 = sbr.rel (%p575) target = $region44
        $region43: #{tpu_custom_call.1} parent=31 // pred_region
          %s579 = ssub.s32 128, 128
          %580 = vsyncadd %s566, %s579
          %s581 = smul.addr %s26, 128
          %s582 = scalar_lea.hbm %s3, %s581
          %s584 = sshll.u32 %s569, 4
          %s585 = int_to_ptr.vmem [resolvable:$true] %s584
          %587 = dma.vmem_to_hbm [thread:$0]  %s585, 128, %s582, %s566
        $region44: #{tpu_custom_call.1} parent=31 // pred_fallthru
          _
        // Predicated region
        $region45: #{tpu_custom_call.1} parent=31 // pred_check
          %p588 = pneg %p180
        $region46: #{tpu_custom_call.1} parent=31 // pred_check_branch
          %590 = sbr.rel (%p588) target = $region48
        $region47: #{tpu_custom_call.1} parent=31 // pred_region
          %s592 = ssub.s32 128, 128
          %593 = vsyncadd %s571, %s592
          %s594 = smul.addr %s26, 128
          %s595 = scalar_lea.hbm %s4, %s594
          %s597 = sshll.u32 %s574, 4
          %s598 = int_to_ptr.vmem [resolvable:$true] %s597
          %600 = dma.vmem_to_hbm [thread:$0]  %s598, 128, %s595, %s571
        $region48: #{tpu_custom_call.1} parent=31 // pred_fallthru
          _
      $region32: #{tpu_custom_call.1} parent=5 // pred_fallthru
        _
      %p601 = scmp.le.s32.totalorder 2, %s17
      // Predicated region
      $region49: #{tpu_custom_call.1} parent=5 // pred_check
        %p602 = pneg %p601
      $region50: #{tpu_custom_call.1} parent=5 // pred_check_branch
        %604 = sbr.rel (%p602) target = $region52
      $region51: #{tpu_custom_call.1} parent=5 // pred_region
        %s605 = ssub.s32 %s17, 2
        // Predicated region
        $region53: #{tpu_custom_call.1} parent=51 // pred_check
          %p606 = pneg %p160
        $region54: #{tpu_custom_call.1} parent=51 // pred_check_branch
          %608 = sbr.rel (%p606) target = $region56
        $region55: #{tpu_custom_call.1} parent=51 // pred_region
          %s609 = sand.u32 %s145, 1
          %s610 = scalar_lea.sflag [#allocation5], %s609
          %s611 = sand.u32 %s145, 1
          %s612 = smul.addr %s611, 8
          %s613 = scalar_lea.vmem [#allocation4], %s612
          %614 = dma.done %s610, 128
        $region56: #{tpu_custom_call.1} parent=51 // pred_fallthru
          _
        // Predicated region
        $region57: #{tpu_custom_call.1} parent=51 // pred_check
          %p615 = pneg %p186
        $region58: #{tpu_custom_call.1} parent=51 // pred_check_branch
          %617 = sbr.rel (%p615) target = $region60
        $region59: #{tpu_custom_call.1} parent=51 // pred_region
          %s618 = sand.u32 %s171, 1
          %s619 = scalar_lea.sflag [#allocation7], %s618
          %s620 = sand.u32 %s171, 1
          %s621 = smul.addr %s620, 8
          %s622 = scalar_lea.vmem [#allocation6], %s621
          %623 = dma.done %s619, 128
        $region60: #{tpu_custom_call.1} parent=51 // pred_fallthru
          _
      $region52: #{tpu_custom_call.1} parent=5 // pred_fallthru
        _
    $region6: #{tpu_custom_call.1} parent=1 // loop_footer
      %s21 = sadd.s32 1, %s17
    $region7: #{tpu_custom_call.1} parent=1 // loop_footer_branch
      %16 = sbr.rel target = $region3
    $region8: #{tpu_custom_call.1} parent=1 // loop_exit
      _
    %624 = vsyncpa [#allocation5], 1
    %s625 = scalar_lea.sflag [#allocation5], 1
    %626 = vsyncpa %s625, 1
    %627 = vsyncpa [#allocation7], 1
    %s628 = scalar_lea.sflag [#allocation7], 1
    %629 = vsyncpa %s628, 1

</llo_original>
